<compile_context>
chip_gen: v6e
topology: v6e:2x2x1
jax: 0.10.0
libtpu: 0.0.40
codegen_flags: <defaults>
</compile_context>

<pallas_src>
import functools

import jax
import jax.numpy as jnp
from jax.experimental import pallas as pl
from jax.experimental.pallas import tpu as pltpu


_EVAL_TILE_BYTES = 4 << 20            # ~4 MiB per block (eval path)
_TRAIN_TILE_BYTES = 2 << 20           # ~2 MiB per block (training path: hash temps)
_VMEM_LIMIT_BYTES = 32 * 1024 * 1024  # safe on v5e/v6e (128 MiB) and v7x (64 MiB)


def _i32(u):
    """A uint32 literal as a wrapped (two's complement) int32 constant."""
    u &= 0xFFFFFFFF
    return jnp.int32(u - (1 << 32)) if u >= (1 << 31) else jnp.int32(u)


def _pe_eval_kernel(x_ref, pe_ref, o_ref):
    # x_ref: (ts, B, D), pe_ref: (ts, 1, D) -> broadcast over batch in-kernel.
    o_ref[...] = (x_ref[...] + pe_ref[...]).astype(o_ref.dtype)


def _pe_train_kernel(seed_ref, x_ref, pe_ref, o_ref, *, p):
    y = x_ref[...] + pe_ref[...]                       # (ts, B, D)
    ts, B, D = y.shape

    # Global element index (independent of the tiling -> mask invariant to block
    # size).  Values may wrap for >2^31 elements, which only permutes the stream.
    r = jax.lax.broadcasted_iota(jnp.int32, y.shape, 0) + pl.program_id(0) * ts
    b = jax.lax.broadcasted_iota(jnp.int32, y.shape, 1)
    d = jax.lax.broadcasted_iota(jnp.int32, y.shape, 2)
    g = (r * B + b) * D + d

    # Counter-based hash (splitmix32 finalizer).  All arithmetic is int32 with
    # wraparound, which is bit-identical to uint32 arithmetic; logical right
    # shifts are emulated as (arithmetic shift) & mask.  Plain jnp ops only, so
    # this lowers on Mosaic and on the interpret/CPU fallback path alike.
    s = seed_ref[0]
    h = g * _i32(0x9E3779B1) + s * _i32(0x85EBCA77)
    h = h ^ ((h >> 16) & 0xFFFF)
    h = h * _i32(0x7FEB352D)
    h = h ^ ((h >> 15) & 0x1FFFF)
    h = h * _i32(0x846CA68B)
    h = h ^ ((h >> 16) & 0xFFFF)

    # Top 24 bits -> uniform in [0, 1); keep with probability 1 - p (inverted
    # dropout).  2^-24 quantization of p is negligible for dropout.
    u = ((h >> 8) & 0xFFFFFF).astype(jnp.float32) * jnp.float32(1.0 / (1 << 24))
    keep = u >= jnp.float32(p)
    scale = jnp.float32(1.0 / (1.0 - p))
    o_ref[...] = jnp.where(keep, y * scale, 0.0).astype(o_ref.dtype)


def _row_tile(S, row_bytes, target_bytes):
    """Rows per block: ~target bytes per block; >= ~4 steps for moderate sizes."""
    total = S * row_bytes
    if total <= target_bytes:
        return S                                    # single block
    ts = max(1, target_bytes // max(row_bytes, 1))
    if total < 4 * target_bytes:
        # Moderate size: ~4 balanced steps so v7x's two TensorCores both get work.
        ts = max(1, pl.cdiv(S, 4))
    return min(ts, S)


def trainable_positional_encoding(x, pe, *, p=0.1, training=False, seed=0):
    """x: (S, B, D); pe: (max_len, 1, D). Returns dropout(x + pe[:S])."""
    S, B, D = x.shape
    itemsize = x.dtype.itemsize
    N = S * B * D

    if training and p >= 1.0:
        return jnp.zeros_like(x)

    # Static slice of the parameter (pe[:x.shape[0]]); NOT broadcast over batch
    # in the wrapper -- the kernel broadcasts, so HBM traffic stays ~2N bytes.
    pe_s = pe[:S]                                    # (S, 1, D)

    use_dropout = training and p > 0.0
    target = _TRAIN_TILE_BYTES if use_dropout else _EVAL_TILE_BYTES
    ts = _row_tile(S, B * D * itemsize, target)
    grid = (pl.cdiv(S, ts),)

    out_shape = jax.ShapeDtypeStruct((S, B, D), x.dtype)
    # Real traffic: read x (N) + write out (N) + read pe (S*D).
    cost = pl.CostEstimate(
        flops=(10 * N if use_dropout else N),
        transcendentals=0,
        bytes_accessed=2 * N * itemsize + S * D * itemsize,
    )
    cparams = pltpu.CompilerParams(
        dimension_semantics=("parallel",),   # no carry: lets v7x split the rows
        vmem_limit_bytes=_VMEM_LIMIT_BYTES,
    )

    if use_dropout:
        seed_arr = jnp.asarray([seed], dtype=jnp.int32)
        kernel = functools.partial(_pe_train_kernel, p=float(p))
        return pl.pallas_call(
            kernel,
            out_shape=out_shape,
            grid_spec=pltpu.PrefetchScalarGridSpec(
                num_scalar_prefetch=1,       # seed lands in SMEM
                grid=grid,
                in_specs=[
                    pl.BlockSpec((ts, B, D), lambda i, seed_ref: (i, 0, 0)),
                    pl.BlockSpec((ts, 1, D), lambda i, seed_ref: (i, 0, 0)),
                ],
                out_specs=pl.BlockSpec((ts, B, D), lambda i, seed_ref: (i, 0, 0)),
            ),
            compiler_params=cparams,
            cost_estimate=cost,
        )(seed_arr, x, pe_s)

    # Eval / p == 0: no scalar prefetch, no PRNG -- the common path.
    return pl.pallas_call(
        _pe_eval_kernel,
        out_shape=out_shape,
        grid=grid,
        in_specs=[
            pl.BlockSpec((ts, B, D), lambda i: (i, 0, 0)),
            pl.BlockSpec((ts, 1, D), lambda i: (i, 0, 0)),
        ],
        out_specs=pl.BlockSpec((ts, B, D), lambda i: (i, 0, 0)),
        compiler_params=cparams,
        cost_estimate=cost,
    )(x, pe_s)


if __name__ == "__main__":
    key = jax.random.PRNGKey(0)
    kx, kpe, kx2, kpe2 = jax.random.split(key, 4)

    # --- Test 1: module-consistent small shapes (max_len=10, d_model=32) ----
    max_len, S, B, D = 10, 8, 2, 32
    x = jax.random.normal(kx, (S, B, D), dtype=jnp.float32)
    # The module initializes pe to zeros; use non-zero values so the
    # broadcast-add path is actually exercised.
    pe = 0.1 * jax.random.normal(kpe, (max_len, 1, D), dtype=jnp.float32)

    out = jax.block_until_ready(
        trainable_positional_encoding(x, pe, p=0.1, training=False))
    ref = x + pe[:S]
    assert out.shape == (S, B, D)
    assert jnp.allclose(out, ref, atol=1e-6, rtol=1e-6)

    # Small-shape training path (masked-store + dropout structural check).
    out_ts = jax.block_until_ready(
        trainable_positional_encoding(x, pe, p=0.25, training=True, seed=7))
    keep_s = out_ts != 0.0
    assert jnp.allclose(jnp.where(keep_s, out_ts, 0.0),
                        jnp.where(keep_s, ref / 0.75, 0.0),
                        atol=1e-5, rtol=1e-5)

    # --- Test 2: larger lane-dense shape -> multi-tile pipelined grid -------
    S2, B2, D2, max_len2 = 1024, 8, 256, 1024
    x_l = jax.random.normal(kx2, (S2, B2, D2), dtype=jnp.float32)
    pe_l = 0.1 * jax.random.normal(kpe2, (max_len2, 1, D2), dtype=jnp.float32)
    out_l = jax.block_until_ready(
        trainable_positional_encoding(x_l, pe_l, p=0.1, training=False))
    ref_l = x_l + pe_l[:S2]
    assert out_l.shape == (S2, B2, D2)
    assert jnp.allclose(out_l, ref_l, atol=1e-6, rtol=1e-6)

    # --- Test 3: training-mode dropout (counter-hash PRNG, tiled grid) ------
    # TODO(synk): dropout uses an in-kernel counter-based hash, so the mask is
    # only statistically equivalent to torch.nn.Dropout (no bit-match).
    p_drop = 0.1
    out_t = jax.block_until_ready(
        trainable_positional_encoding(x_l, pe_l, p=p_drop, training=True,
                                      seed=123))
    keep = out_t != 0.0
    keep_frac = float(jnp.mean(keep.astype(jnp.float32)))
    assert abs(keep_frac - (1.0 - p_drop)) < 0.01, keep_frac
    scaled = ref_l / (1.0 - p_drop)
    assert jnp.allclose(jnp.where(keep, out_t, 0.0),
                        jnp.where(keep, scaled, 0.0), atol=1e-5, rtol=1e-5)

    # Determinism: same seed -> identical mask/output.
    out_t2 = jax.block_until_ready(
        trainable_positional_encoding(x_l, pe_l, p=p_drop, training=True,
                                      seed=123))
    assert jnp.array_equal(out_t, out_t2)

    print("KERNEL_OK")
</pallas_src>

<mosaic_0001>
module attributes {stable_mosaic.version = 11 : i64} {
  func.func @_pe_eval_kernel(%arg0: i32, %arg1: memref<8x2x32xf32, #tpu.memory_space<vmem>>, %arg2: memref<8x1x32xf32, #tpu.memory_space<vmem>>, %arg3: memref<8x2x32xf32, #tpu.memory_space<vmem>>) attributes {dimension_semantics = [#tpu.dimension_semantics<parallel>], iteration_bounds = array<i64: 1>, scalar_prefetch = 0 : i64, scratch_operands = 0 : i64, tpu.core_type = #tpu.core_type<tc>, window_params = [{transform_indices = @transform_0, window_bounds = array<i64: 8, 2, 32>}, {transform_indices = @transform_1, window_bounds = array<i64: 8, 1, 32>}, {transform_indices = @transform_2, window_bounds = array<i64: 8, 2, 32>}]} {
    %c0 = arith.constant 0 : index
    %c0_0 = arith.constant 0 : index
    %c0_1 = arith.constant 0 : index
    %0 = vector.load %arg1[%c0, %c0_0, %c0_1] : memref<8x2x32xf32, #tpu.memory_space<vmem>>, vector<8x2x32xf32>
    %c0_2 = arith.constant 0 : index
    %c0_3 = arith.constant 0 : index
    %c0_4 = arith.constant 0 : index
    %1 = vector.load %arg2[%c0_2, %c0_3, %c0_4] : memref<8x1x32xf32, #tpu.memory_space<vmem>>, vector<8x1x32xf32>
    %2 = vector.broadcast %1 : vector<8x1x32xf32> to vector<8x2x32xf32>
    %3 = arith.addf %0, %2 : vector<8x2x32xf32>
    %c0_5 = arith.constant 0 : index
    %c0_6 = arith.constant 0 : index
    %c0_7 = arith.constant 0 : index
    %4 = vector.load %arg3[%c0_5, %c0_6, %c0_7] : memref<8x2x32xf32, #tpu.memory_space<vmem>>, vector<8x2x32xf32>
    tpu.vector_store %arg3[%c0_5, %c0_6, %c0_7], %3 {strides = array<i32>} : memref<8x2x32xf32, #tpu.memory_space<vmem>>, vector<8x2x32xf32>,
    return
  }
  func.func @transform_0(%arg0: i32) -> (i32, i32, i32) {
    %c0_i32 = arith.constant 0 : i32
    %c0_i32_0 = arith.constant 0 : i32
    %c0_i32_1 = arith.constant 0 : i32
    return %arg0, %c0_i32, %c0_i32_0 : i32, i32, i32
  }
  func.func @transform_1(%arg0: i32) -> (i32, i32, i32) {
    %c0_i32 = arith.constant 0 : i32
    %c0_i32_0 = arith.constant 0 : i32
    %c0_i32_1 = arith.constant 0 : i32
    return %arg0, %c0_i32, %c0_i32_0 : i32, i32, i32
  }
  func.func @transform_2(%arg0: i32) -> (i32, i32, i32) {
    %c0_i32 = arith.constant 0 : i32
    %c0_i32_0 = arith.constant 0 : i32
    %c0_i32_1 = arith.constant 0 : i32
    return %arg0, %c0_i32, %c0_i32_0 : i32, i32, i32
  }
}

</mosaic_0001>

<llo_original>
// kernel: tpu_custom_call.1
$region0: #{tpu_custom_call.1}
  #allocation0 [shape = 'u32[]', space=smem, size = 0x4, offset = 0x4, fixed_abs, tag = 'smem constant byte address 0x4 - core index']
  #allocation1 [shape = 'u32[144,128]{1,0:T(1,128)}', space=vmem, size = 0x12000, scoped, tag = 'internal scratch']
  %s0 = inlined_call_operand.hbm [shape: f32[8,2,32], index: 0, kind: input, shape index: {}]
  %s1 = inlined_call_operand.hbm [shape: f32[8,1,32], index: 1, kind: input, shape index: {}]
  %s2 = inlined_call_operand.hbm [shape: f32[8,2,32], index: 2, kind: output, shape index: {}]
  %s3 = sld [smem:[#allocation0]]
  $region26: #{tpu_custom_call.1} parent=0
    _
  %s5 = ssub.s32 1, %s3
  %s6 = scalar_select 0, %s5, %s3
  $region1: #{tpu_custom_call.1} parent=0
    #allocation2 [shape = 'u8[8192]{0}', space=vmem, size = 0x2000, scoped, tag = 'input window, operand 0, single buffered']
    #allocation3 [shape = 's32[1]{0}', space=sflag, size = 0x4, scoped, tag = 'scoped memory for tpu_custom_call.1']
    #allocation4 [shape = 's32[1]{0}', space=sflag, size = 0x4, scoped, tag = 'scoped memory for tpu_custom_call.1']
    #allocation5 [shape = 'u8[4096]{0}', space=vmem, size = 0x1000, scoped, tag = 'input window, operand 1, single buffered']
    #allocation6 [shape = 's32[1]{0}', space=sflag, size = 0x4, scoped, tag = 'scoped memory for tpu_custom_call.1']
    #allocation7 [shape = 'u8[8192]{0}', space=vmem, size = 0x2000, scoped, tag = 'output window, operand 0, single buffered']
    %7 = vsyncpa [#allocation3], 0
    %8 = vsyncpa [#allocation6], 0
    %9 = vsyncpa [#allocation4], 0
    // Predicated region
    $region2: #{tpu_custom_call.1} parent=1 // pred_check
      _
    $region3: #{tpu_custom_call.1} parent=1 // pred_check_branch
      %11 = sbr.rel (0) target = $region5
    $region4: #{tpu_custom_call.1} parent=1 // pred_region
      %s13 = ssub.s32 256, 256
      %14 = vsyncadd [#allocation3], %s13
      %s15 = sshll.u32 [#allocation2], 4
      %s16 = int_to_ptr.vmem [resolvable:$true] %s15
      %21 = dma.hbm_to_vmem [thread:$0]  %s0, 256, %s16, [#allocation3], 32, 32, 2
    $region5: #{tpu_custom_call.1} parent=1 // pred_fallthru
      _
    // Predicated region
    $region6: #{tpu_custom_call.1} parent=1 // pred_check
      _
    $region7: #{tpu_custom_call.1} parent=1 // pred_check_branch
      %23 = sbr.rel (0) target = $region9
    $region8: #{tpu_custom_call.1} parent=1 // pred_region
      %s25 = ssub.s32 128, 128
      %26 = vsyncadd [#allocation6], %s25
      %s27 = sshll.u32 [#allocation5], 4
      %s28 = int_to_ptr.vmem [resolvable:$true] %s27
      %33 = dma.hbm_to_vmem [thread:$0]  %s1, 128, %s28, [#allocation6], 16, 16, 1
    $region9: #{tpu_custom_call.1} parent=1 // pred_fallthru
      _
    // Predicated region
    $region10: #{tpu_custom_call.1} parent=1 // pred_check
      _
    $region11: #{tpu_custom_call.1} parent=1 // pred_check_branch
      %35 = sbr.rel (0) target = $region13
    $region12: #{tpu_custom_call.1} parent=1 // pred_region
      %36 = dma.done [#allocation3], 256
    $region13: #{tpu_custom_call.1} parent=1 // pred_fallthru
      _
    // Predicated region
    $region14: #{tpu_custom_call.1} parent=1 // pred_check
      _
    $region15: #{tpu_custom_call.1} parent=1 // pred_check_branch
      %38 = sbr.rel (0) target = $region17
    $region16: #{tpu_custom_call.1} parent=1 // pred_region
      %39 = dma.done [#allocation6], 128
    $region17: #{tpu_custom_call.1} parent=1 // pred_fallthru
      _
    %v40 = vld [vmem:[#allocation2] sm:$0x3]
    %v41 = vld [vmem:[#allocation2 + $0x2] sm:$0x3]
    %v42 = vld [vmem:[#allocation2 + $0x4] sm:$0x3]
    %v43 = vld [vmem:[#allocation2 + $0x6] sm:$0x3]
    %v44 = vld [vmem:[#allocation2 + $0x8] sm:$0x3]
    %v45 = vld [vmem:[#allocation2 + $0xa] sm:$0x3]
    %v46 = vld [vmem:[#allocation2 + $0xc] sm:$0x3]
    %v47 = vld [vmem:[#allocation2 + $0xe] sm:$0x3]
    %v48 = vld [vmem:[#allocation5] sm:$0x1]
    %v49 = vld [vmem:[#allocation5 + $0x1] sm:$0x1]
    %v50 = vld [vmem:[#allocation5 + $0x2] sm:$0x1]
    %v51 = vld [vmem:[#allocation5 + $0x3] sm:$0x1]
    %v52 = vld [vmem:[#allocation5 + $0x4] sm:$0x1]
    %v53 = vld [vmem:[#allocation5 + $0x5] sm:$0x1]
    %v54 = vld [vmem:[#allocation5 + $0x6] sm:$0x1]
    %v55 = vld [vmem:[#allocation5 + $0x7] sm:$0x1]
    %v64 = vlaneseq
    %v65 = vshrl.u32 %v64, 7
    %v66 = vsub.s32 0, %v65
    %v67 = vrot.slane %v48, %v66
    %v68 = vlaneseq
    %v69 = vshrl.u32 %v68, 7
    %v70 = vsub.s32 0, %v69
    %v71 = vrot.slane %v49, %v70
    %v72 = vlaneseq
    %v73 = vshrl.u32 %v72, 7
    %v74 = vsub.s32 0, %v73
    %v75 = vrot.slane %v50, %v74
    %v76 = vlaneseq
    %v77 = vshrl.u32 %v76, 7
    %v78 = vsub.s32 0, %v77
    %v79 = vrot.slane %v51, %v78
    %v80 = vlaneseq
    %v81 = vshrl.u32 %v80, 7
    %v82 = vsub.s32 0, %v81
    %v83 = vrot.slane %v52, %v82
    %v84 = vlaneseq
    %v85 = vshrl.u32 %v84, 7
    %v86 = vsub.s32 0, %v85
    %v87 = vrot.slane %v53, %v86
    %v88 = vlaneseq
    %v89 = vshrl.u32 %v88, 7
    %v90 = vsub.s32 0, %v89
    %v91 = vrot.slane %v54, %v90
    %v92 = vlaneseq
    %v93 = vshrl.u32 %v92, 7
    %v94 = vsub.s32 0, %v93
    %v95 = vrot.slane %v55, %v94
    %v104 = vadd.f32 %v40, %v67
    %v105 = vadd.f32 %v41, %v71
    %v106 = vadd.f32 %v42, %v75
    %v107 = vadd.f32 %v43, %v79
    %v108 = vadd.f32 %v44, %v83
    %v109 = vadd.f32 %v45, %v87
    %v110 = vadd.f32 %v46, %v91
    %v111 = vadd.f32 %v47, %v95
    %vm112 = vcmask 254976
    %113 = vst.msk [vmem:[#allocation7] sm:$0x3] %vm112, %v104
    %114 = vst.msk [vmem:[#allocation7 + $0x2] sm:$0x3] %vm112, %v105
    %115 = vst.msk [vmem:[#allocation7 + $0x4] sm:$0x3] %vm112, %v106
    %116 = vst.msk [vmem:[#allocation7 + $0x6] sm:$0x3] %vm112, %v107
    %117 = vst.msk [vmem:[#allocation7 + $0x8] sm:$0x3] %vm112, %v108
    %118 = vst.msk [vmem:[#allocation7 + $0xa] sm:$0x3] %vm112, %v109
    %119 = vst.msk [vmem:[#allocation7 + $0xc] sm:$0x3] %vm112, %v110
    %120 = vst.msk [vmem:[#allocation7 + $0xe] sm:$0x3] %vm112, %v111
    // Predicated region
    $region18: #{tpu_custom_call.1} parent=1 // pred_check
      _
    $region19: #{tpu_custom_call.1} parent=1 // pred_check_branch
      %122 = sbr.rel (0) target = $region21
    $region20: #{tpu_custom_call.1} parent=1 // pred_region
      %s124 = ssub.s32 256, 256
      %125 = vsyncadd [#allocation4], %s124
      %s126 = sshll.u32 [#allocation7], 4
      %s127 = int_to_ptr.vmem [resolvable:$true] %s126
      %132 = dma.vmem_to_hbm [thread:$0]  %s127, 256, %s2, [#allocation4], 32, 32, 2
    $region21: #{tpu_custom_call.1} parent=1 // pred_fallthru
      _
    // Predicated region
    $region22: #{tpu_custom_call.1} parent=1 // pred_check
      _
    $region23: #{tpu_custom_call.1} parent=1 // pred_check_branch
      %134 = sbr.rel (0) target = $region25
    $region24: #{tpu_custom_call.1} parent=1 // pred_region
      %135 = dma.done [#allocation4], 256
    $region25: #{tpu_custom_call.1} parent=1 // pred_fallthru
      _
    %136 = vsyncpa [#allocation3], 1
    %137 = vsyncpa [#allocation6], 1
    %138 = vsyncpa [#allocation4], 1

</llo_original>
